<compile_context>
chip_gen: v7x
topology: tpu7x:2x2x1
jax: 0.10.0
libtpu: 0.0.40
codegen_flags: <defaults>
</compile_context>

<pallas_src>
import functools

import jax
import jax.numpy as jnp
from jax.experimental import pallas as pl
from jax.experimental.pallas import tpu as pltpu

SUBLANE = 8
TILE_BUDGET_BYTES = 8 * 1024 * 1024      # A-tile + out-tile, double-buffered


def _round_up(x, m):
    return (x + m - 1) // m * m


def _choose_tm(mp, k, cout):
    """Pick the M tile: a multiple-of-8 divisor of mp, as fat as the budget allows.

    Keeps >= 2 grid steps when mp is large enough so both v7x TensorCores get
    work; caps the tile so the double-buffered A (bf16) + out (f32) tiles stay
    well under v5e's 16 MiB default scoped VMEM.
    """
    upper = min(mp, 1024)
    if mp >= 256:
        upper = min(upper, mp // 2)       # prefer >= 2 parallel grid steps
    upper -= upper % SUBLANE
    for cand in range(max(upper, SUBLANE), SUBLANE - 1, -SUBLANE):
        if mp % cand == 0 and 2 * cand * (2 * k + 4 * cout) <= TILE_BUDGET_BYTES:
            return cand
    return SUBLANE


def _gemm_bias_act_kernel(a_ref, w_ref, b_ref, o_ref, *, apply_elu):
    """One M tile of: out = act(patches @ W + b).

    a_ref: (tm, K)    bf16  K-packed im2col patches (K = kh*kw*cin, no pad waste)
    w_ref: (K, cout)  bf16  K-packed weights -> whole conv is ONE dense GEMM
    b_ref: (1, cout)  f32
    o_ref: (tm, cout)
    """
    acc = jnp.dot(a_ref[...], w_ref[...], preferred_element_type=jnp.float32)
    acc = acc + b_ref[...]
    if apply_elu:
        # ELU(alpha=1): x if x > 0 else expm1(x).  expm1 evaluated from exp with
        # a short Taylor switchover near 0 -> ~1e-6 parity with torch.nn.ELU
        # without relying on a dedicated expm1 lowering in Mosaic.
        xn = jnp.minimum(acc, 0.0)
        big = jnp.exp(xn) - 1.0
        small = xn * (1.0 + xn * (0.5 + xn * (1.0 / 6.0
                      + xn * (1.0 / 24.0 + xn * (1.0 / 120.0)))))
        acc = jnp.where(acc > 0.0, acc, jnp.where(xn > -0.25, small, big))
    o_ref[...] = acc.astype(o_ref.dtype)


def conv2d_nhwc_pallas(x, layer, *, out_dtype):
    """One conv layer: XLA K-packed im2col + a single fused Pallas GEMM/bias/ELU."""
    B, H, W, cin = x.shape
    kh, kw = layer["kh"], layer["kw"]
    stride, padding = layer["stride"], layer["padding"]
    cout = layer["cout"]
    hout = (H + 2 * padding - kh) // stride + 1
    wout = (W + 2 * padding - kw) // stride + 1
    k = kh * kw * cin

    # K-packed patches: (B*hout*wout, kh*kw*cin).  All taps live in the
    # contraction dim, so each output tile is one dense matmul: no per-tap
    # zero-padded-K GEMMs, no per-tap accumulator RMW, no strided in-kernel
    # loads for the stride-2 layers.
    if kh == 1 and kw == 1 and stride == 1 and padding == 0:
        patches = x.reshape(B * hout * wout, k)
    else:
        xp = jnp.pad(x, ((0, 0), (padding, padding), (padding, padding), (0, 0)))
        taps = []
        for i in range(kh):
            for j in range(kw):
                taps.append(jax.lax.slice(
                    xp,
                    (0, i, j, 0),
                    (B, i + (hout - 1) * stride + 1,
                     j + (wout - 1) * stride + 1, cin),
                    (1, stride, stride, 1)))
        patches = jnp.concatenate(taps, axis=-1).reshape(B * hout * wout, k)

    m = B * hout * wout
    mp = _round_up(m, SUBLANE)
    if mp != m:
        patches = jnp.pad(patches, ((0, mp - m), (0, 0)))

    tm = _choose_tm(mp, k, cout)
    grid_m = mp // tm

    out_itemsize = jnp.dtype(out_dtype).itemsize
    vmem_limit = int(min(
        64 * 1024 * 1024,
        2 * (tm * k * 2 + tm * cout * out_itemsize + k * cout * 2 + cout * 4)
        + 8 * 1024 * 1024))

    kernel = functools.partial(_gemm_bias_act_kernel, apply_elu=layer["elu"])

    # K and cout blocks span the full (real, unpadded) dims -> no lane padding
    # of activations/weights ever hits HBM.
    # TODO(synk): weights/bias have constant index maps; pipeline_mode=
    # pl.Buffered(1) would halve their VMEM footprint on v7x once that option
    # is safe to use uniformly (incl. interpret mode).
    out = pl.pallas_call(
        kernel,
        out_shape=jax.ShapeDtypeStruct((mp, cout), out_dtype),
        grid=(grid_m,),
        in_specs=[
            pl.BlockSpec((tm, k), lambda i: (i, 0)),
            pl.BlockSpec((k, cout), lambda i: (0, 0)),
            pl.BlockSpec((1, cout), lambda i: (0, 0)),
        ],
        out_specs=pl.BlockSpec((tm, cout), lambda i: (i, 0)),
        compiler_params=pltpu.CompilerParams(
            dimension_semantics=("parallel",),
            vmem_limit_bytes=vmem_limit),
    )(patches, layer["w"], layer["bias"])

    if mp != m:
        out = out[:m]
    return out.reshape(B, hout, wout, cout)


def _prepare_conv_layer(w, b, stride, padding, apply_elu):
    """PyTorch layout (cout, cin, kh, kw) -> K-packed GEMM layout."""
    cout, cin, kh, kw = w.shape
    # Row order (i, j, c) matches the im2col concat order above.
    w_k = jnp.transpose(w, (2, 3, 1, 0)).reshape(kh * kw * cin, cout)
    return dict(
        w=w_k.astype(jnp.bfloat16),
        bias=b.reshape(1, cout).astype(jnp.float32),
        kh=kh, kw=kw, stride=stride, padding=padding,
        elu=apply_elu, cin=cin, cout=cout)


def init_cnn_encoder_params(key, in_channels, hidden_channels, out_channels,
                            downsamplings):
    """Deterministic synthetic params mirroring CnnEncoder.__init__ shapes (raw)."""
    def conv_param(kk, cout, cin, kh, kw):
        kw_, kb_ = jax.random.split(kk)
        fan_in = cin * kh * kw
        scale = 1.0 / jnp.sqrt(jnp.float32(fan_in))
        w = jax.random.uniform(kw_, (cout, cin, kh, kw), jnp.float32,
                               minval=-scale, maxval=scale)
        b = jax.random.uniform(kb_, (cout,), jnp.float32,
                               minval=-scale, maxval=scale)
        return w, b

    keys = jax.random.split(key, downsamplings + 2)
    raw = []
    # Stem: Conv2d(in, hidden, 5, stride 1, pad 2) + ELU
    w, b = conv_param(keys[0], hidden_channels, in_channels, 5, 5)
    raw.append(dict(w=w, b=b, stride=1, padding=2, elu=True))
    # Downsampling blocks: Conv2d(h*2^i, h*2^(i+1), 3, stride 2, pad 1) + ELU
    for i in range(downsamplings):
        cin = hidden_channels * 2 ** i
        cout = hidden_channels * 2 ** (i + 1)
        w, b = conv_param(keys[i + 1], cout, cin, 3, 3)
        raw.append(dict(w=w, b=b, stride=2, padding=1, elu=True))
    # Head: Conv2d(h*2^D, out, 1) -- no activation
    cin = hidden_channels * 2 ** downsamplings
    w, b = conv_param(keys[-1], out_channels, cin, 1, 1)
    raw.append(dict(w=w, b=b, stride=1, padding=0, elu=False))
    return raw


def prepare_layers(raw_layers):
    return [_prepare_conv_layer(r["w"], r["b"], r["stride"], r["padding"], r["elu"])
            for r in raw_layers]


def cnn_encoder_forward(layers, x_nchw):
    """x_nchw: (B, C_in, H, W) f32 -> (B, out_channels, H/2^D, W/2^D) f32."""
    # Single entry-side layout pass: NCHW f32 -> channels-last bf16 (dense channels).
    x = jnp.transpose(x_nchw, (0, 2, 3, 1)).astype(jnp.bfloat16)
    n = len(layers)
    for li, layer in enumerate(layers):
        last = li == n - 1
        x = conv2d_nhwc_pallas(
            x, layer, out_dtype=jnp.float32 if last else jnp.bfloat16)
    # Single exit-side layout pass back to NCHW.
    return jnp.transpose(x, (0, 3, 1, 2))


def _reference_forward(raw_layers, x_nchw):
    """Pure-JAX f32 reference matching the PyTorch module."""
    x = x_nchw
    for r in raw_layers:
        x = jax.lax.conv_general_dilated(
            x, r["w"], window_strides=(r["stride"], r["stride"]),
            padding=[(r["padding"], r["padding"])] * 2,
            dimension_numbers=("NCHW", "OIHW", "NCHW"))
        x = x + r["b"].reshape(1, -1, 1, 1)
        if r["elu"]:
            x = jnp.where(x > 0, x, jnp.expm1(x))
    return x


if __name__ == "__main__":
    key = jax.random.PRNGKey(0)
    kx, kp = jax.random.split(key)

    # Small shapes: B=2, in_channels=3, hidden=8, out=16, 2 downsamplings, 16x16 input.
    in_channels, hidden_channels, out_channels, downsamplings = 3, 8, 16, 2
    x = jax.random.normal(kx, (2, in_channels, 16, 16), jnp.float32)

    raw_layers = init_cnn_encoder_params(
        kp, in_channels, hidden_channels, out_channels, downsamplings)
    layers = prepare_layers(raw_layers)

    y = cnn_encoder_forward(layers, x)
    y = jax.block_until_ready(y)

    expected = (2, out_channels, 16 // 2 ** downsamplings, 16 // 2 ** downsamplings)
    assert y.shape == expected, y.shape
    assert bool(jnp.isfinite(y).all())

    # bf16 activations vs. f32 reference -> loose tolerance.
    y_ref = _reference_forward(raw_layers, x)
    err = float(jnp.max(jnp.abs(y - y_ref)))
    assert err < 0.2, err

    print("KERNEL_OK")
</pallas_src>

<mosaic_0001>
module attributes {stable_mosaic.version = 11 : i64} {
  func.func @_gemm_bias_act_kernel(%arg0: i32, %arg1: memref<256x75xbf16, #tpu.memory_space<vmem>>, %arg2: memref<75x8xbf16, #tpu.memory_space<vmem>>, %arg3: memref<1x8xf32, #tpu.memory_space<vmem>>, %arg4: memref<256x8xbf16, #tpu.memory_space<vmem>>) attributes {dimension_semantics = [#tpu.dimension_semantics<parallel>], iteration_bounds = array<i64: 2>, scalar_prefetch = 0 : i64, scratch_operands = 0 : i64, tpu.core_type = #tpu.core_type<tc>, window_params = [{transform_indices = @transform_0, window_bounds = array<i64: 256, 75>}, {pipeline_mode = #tpu.pipeline_mode<synchronous>, transform_indices = @transform_1, window_bounds = array<i64: 75, 8>}, {pipeline_mode = #tpu.pipeline_mode<synchronous>, transform_indices = @transform_2, window_bounds = array<i64: 1, 8>}, {transform_indices = @transform_3, window_bounds = array<i64: 256, 8>}]} {
    %c0 = arith.constant 0 : index
    %c0_0 = arith.constant 0 : index
    %0 = vector.load %arg1[%c0, %c0_0] : memref<256x75xbf16, #tpu.memory_space<vmem>>, vector<256x75xbf16>
    %c0_1 = arith.constant 0 : index
    %c0_2 = arith.constant 0 : index
    %1 = vector.load %arg2[%c0_1, %c0_2] : memref<75x8xbf16, #tpu.memory_space<vmem>>, vector<75x8xbf16>
    %cst = arith.constant dense<0.000000e+00> : vector<256x8xf32>
    %2 = tpu.matmul %0, %1, %cst {dimension_numbers = #tpu.dot_dimension_numbers<[1], [0], [0], [1], [0, 0, 1, 1], [], []>} : vector<256x75xbf16>, vector<75x8xbf16>, vector<256x8xf32> -> vector<256x8xf32>
    %c0_3 = arith.constant 0 : index
    %c0_4 = arith.constant 0 : index
    %3 = vector.load %arg3[%c0_3, %c0_4] : memref<1x8xf32, #tpu.memory_space<vmem>>, vector<1x8xf32>
    %4 = vector.broadcast %3 : vector<1x8xf32> to vector<256x8xf32>
    %5 = arith.addf %2, %4 : vector<256x8xf32>
    %cst_5 = arith.constant 0.000000e+00 : f32
    %6 = vector.broadcast %cst_5 : f32 to vector<256x8xf32>
    %7 = arith.minimumf %5, %6 : vector<256x8xf32>
    %8 = math.exp %7 : vector<256x8xf32>
    %cst_6 = arith.constant 1.000000e+00 : f32
    %9 = vector.broadcast %cst_6 : f32 to vector<256x8xf32>
    %10 = arith.subf %8, %9 : vector<256x8xf32>
    %cst_7 = arith.constant 0.00833333377 : f32
    %11 = vector.broadcast %cst_7 : f32 to vector<256x8xf32>
    %12 = arith.mulf %7, %11 : vector<256x8xf32>
    %cst_8 = arith.constant 0.0416666679 : f32
    %13 = vector.broadcast %cst_8 : f32 to vector<256x8xf32>
    %14 = arith.addf %13, %12 : vector<256x8xf32>
    %15 = arith.mulf %7, %14 : vector<256x8xf32>
    %cst_9 = arith.constant 0.166666672 : f32
    %16 = vector.broadcast %cst_9 : f32 to vector<256x8xf32>
    %17 = arith.addf %16, %15 : vector<256x8xf32>
    %18 = arith.mulf %7, %17 : vector<256x8xf32>
    %cst_10 = arith.constant 5.000000e-01 : f32
    %19 = vector.broadcast %cst_10 : f32 to vector<256x8xf32>
    %20 = arith.addf %19, %18 : vector<256x8xf32>
    %21 = arith.mulf %7, %20 : vector<256x8xf32>
    %cst_11 = arith.constant 1.000000e+00 : f32
    %22 = vector.broadcast %cst_11 : f32 to vector<256x8xf32>
    %23 = arith.addf %22, %21 : vector<256x8xf32>
    %24 = arith.mulf %7, %23 : vector<256x8xf32>
    %cst_12 = arith.constant 0.000000e+00 : f32
    %25 = vector.broadcast %cst_12 : f32 to vector<256x8xf32>
    %26 = arith.cmpf ogt, %5, %25 : vector<256x8xf32>
    %cst_13 = arith.constant -2.500000e-01 : f32
    %27 = vector.broadcast %cst_13 : f32 to vector<256x8xf32>
    %28 = arith.cmpf ogt, %7, %27 : vector<256x8xf32>
    %29 = arith.select %28, %24, %10 : vector<256x8xi1>, vector<256x8xf32>
    %30 = arith.select %26, %5, %29 : vector<256x8xi1>, vector<256x8xf32>
    %31 = arith.truncf %30 : vector<256x8xf32> to vector<256x8xbf16>
    %c0_14 = arith.constant 0 : index
    %c0_15 = arith.constant 0 : index
    %32 = vector.load %arg4[%c0_14, %c0_15] : memref<256x8xbf16, #tpu.memory_space<vmem>>, vector<256x8xbf16>
    tpu.vector_store %arg4[%c0_14, %c0_15], %31 {strides = array<i32>} : memref<256x8xbf16, #tpu.memory_space<vmem>>, vector<256x8xbf16>,
    return
  }
  func.func @transform_0(%arg0: i32) -> (i32, i32) {
    %c0_i32 = arith.constant 0 : i32
    %c0_i32_0 = arith.constant 0 : i32
    return %arg0, %c0_i32 : i32, i32
  }
  func.func @transform_1(%arg0: i32) -> (i32, i32) {
    %c0_i32 = arith.constant 0 : i32
    %c0_i32_0 = arith.constant 0 : i32
    %c0_i32_1 = arith.constant 0 : i32
    return %c0_i32, %c0_i32_0 : i32, i32
  }
  func.func @transform_2(%arg0: i32) -> (i32, i32) {
    %c0_i32 = arith.constant 0 : i32
    %c0_i32_0 = arith.constant 0 : i32
    %c0_i32_1 = arith.constant 0 : i32
    return %c0_i32, %c0_i32_0 : i32, i32
  }
  func.func @transform_3(%arg0: i32) -> (i32, i32) {
    %c0_i32 = arith.constant 0 : i32
    %c0_i32_0 = arith.constant 0 : i32
    return %arg0, %c0_i32 : i32, i32
  }
}

</mosaic_0001>

<llo_original>
// kernel: tpu_custom_call.1
$region0: #{tpu_custom_call.1}
  #allocation0 [shape = 'u32[]', space=smem, size = 0x4, offset = 0x4, fixed_abs, tag = 'smem constant byte address 0x4 - core index']
  #allocation1 [shape = 'u32[144,128]{1,0:T(1,128)}', space=vmem, size = 0x12000, scoped, tag = 'internal scratch']
  %s0 = inlined_call_operand.vmem [shape: bf16[512,75], index: 0, kind: input, shape index: {}]
  %s1 = inlined_call_operand.vmem [shape: bf16[75,8], index: 1, kind: input, shape index: {}]
  %s2 = inlined_call_operand.vmem [shape: f32[1,8], index: 2, kind: input, shape index: {}]
  %s3 = inlined_call_operand.vmem [shape: bf16[512,8], index: 3, kind: output, shape index: {}]
  %s4 = sld [smem:[#allocation0]]
  $region45: #{tpu_custom_call.1} parent=0
    _
  %s6 = ssub.s32 1, %s4
  %s7 = scalar_select 0, %s6, %s4
  loop: start=0, step=1, limit=4
  $region2: #{tpu_custom_call.1} parent=0 // loop_pre_header
    _
  $region3: #{tpu_custom_call.1} parent=0 // loop_header
    %s9 = sphi 0, %s13
    %p10 = scmp.ge.s32.totalorder %s9, 4
    %s19 = sphi 0, %s21
    %s22 = sphi 0, %s19
    %s23 = sphi 0, %s22
    %s39 = sphi 0, %s23
    %s43 = sphi 0, %s43
    %s45 = sphi 0, %s43
    %s46 = sphi 0, %s45
    %s60 = sphi 0, %s46
    %s64 = sphi 0, %s64
    %s66 = sphi 0, %s64
    %s67 = sphi 0, %s66
    %s81 = sphi 0, %s67
    %s87 = sphi 0, %s89
    %s90 = sphi 0, %s87
    %s91 = sphi 0, %s90
    %s107 = sphi 0, %s91
  $region4: #{tpu_custom_call.1} parent=0 // loop_header_branch
    %12 = sbr.rel (%p10) target = $region8
  $region5: #{tpu_custom_call.1} parent=0 // loop_body
    %s14 = ssub.s32 %s9, 1
    %s15 = ssub.s32 %s9, 2
    %s16 = sadd.s32 %s9, 1
    %s17 = ssub.s32 %s9, %s16
    %p18 = scmp.eq.s32.totalorder %s17, 0
    %s20 = sadd.s32 %s19, 1
    %s21 = scalar_select %p18, %s19, %s20
    %p24 = pneg %p18
    %p25 = scmp.eq.s32.totalorder %s9, 1
    %p26 = por %p24, %p25
    %p27 = scmp.ne.s32.totalorder %s19, %s22
    %p28 = scmp.eq.s32.totalorder %s9, 0
    %p29 = por %p27, %p28
    %p30 = scmp.ne.s32.totalorder %s19, %s22
    %p31 = scmp.eq.s32.totalorder %s14, 1
    %p32 = por %p30, %p31
    %p33 = scmp.ne.s32.totalorder %s22, %s23
    %p34 = scmp.eq.s32.totalorder %s14, 0
    %p35 = por %p33, %p34
    %p36 = scmp.ne.s32.totalorder %s22, %s23
    %p37 = scmp.eq.s32.totalorder %s15, 1
    %p38 = por %p36, %p37
    %p40 = scmp.ne.s32.totalorder %s23, %s39
    %p41 = scmp.eq.s32.totalorder %s15, 0
    %p42 = por %p40, %p41
    %s44 = sadd.s32 %s43, 1
    %p47 = scmp.eq.s32.totalorder %s9, 1
    %p48 = scmp.ne.s32.totalorder %s43, %s45
    %p49 = scmp.eq.s32.totalorder %s9, 0
    %p50 = por %p48, %p49
    %p51 = scmp.ne.s32.totalorder %s43, %s45
    %p52 = scmp.eq.s32.totalorder %s14, 1
    %p53 = por %p51, %p52
    %p54 = scmp.ne.s32.totalorder %s45, %s46
    %p55 = scmp.eq.s32.totalorder %s14, 0
    %p56 = por %p54, %p55
    %p57 = scmp.ne.s32.totalorder %s45, %s46
    %p58 = scmp.eq.s32.totalorder %s15, 1
    %p59 = por %p57, %p58
    %p61 = scmp.ne.s32.totalorder %s46, %s60
    %p62 = scmp.eq.s32.totalorder %s15, 0
    %p63 = por %p61, %p62
    %s65 = sadd.s32 %s64, 1
    %p68 = scmp.eq.s32.totalorder %s9, 1
    %p69 = scmp.ne.s32.totalorder %s64, %s66
    %p70 = scmp.eq.s32.totalorder %s9, 0
    %p71 = por %p69, %p70
    %p72 = scmp.ne.s32.totalorder %s64, %s66
    %p73 = scmp.eq.s32.totalorder %s14, 1
    %p74 = por %p72, %p73
    %p75 = scmp.ne.s32.totalorder %s66, %s67
    %p76 = scmp.eq.s32.totalorder %s14, 0
    %p77 = por %p75, %p76
    %p78 = scmp.ne.s32.totalorder %s66, %s67
    %p79 = scmp.eq.s32.totalorder %s15, 1
    %p80 = por %p78, %p79
    %p82 = scmp.ne.s32.totalorder %s67, %s81
    %p83 = scmp.eq.s32.totalorder %s15, 0
    %p84 = por %p82, %p83
    %s85 = ssub.s32 %s9, %s16
    %p86 = scmp.eq.s32.totalorder %s85, 0
    %s88 = sadd.s32 %s87, 1
    %s89 = scalar_select %p86, %s87, %s88
    %p92 = pneg %p86
    %p93 = scmp.eq.s32.totalorder %s9, 1
    %p94 = por %p92, %p93
    %p95 = scmp.ne.s32.totalorder %s87, %s90
    %p96 = scmp.eq.s32.totalorder %s9, 0
    %p97 = por %p95, %p96
    %p98 = scmp.ne.s32.totalorder %s87, %s90
    %p99 = scmp.eq.s32.totalorder %s14, 1
    %p100 = por %p98, %p99
    %p101 = scmp.ne.s32.totalorder %s90, %s91
    %p102 = scmp.eq.s32.totalorder %s14, 0
    %p103 = por %p101, %p102
    %p104 = scmp.ne.s32.totalorder %s90, %s91
    %p105 = scmp.eq.s32.totalorder %s15, 1
    %p106 = por %p104, %p105
    %p108 = scmp.ne.s32.totalorder %s91, %s107
    %p109 = scmp.eq.s32.totalorder %s15, 0
    %p110 = por %p108, %p109
    %p111 = scmp.le.s32.totalorder 1, %s9
    %p112 = scmp.lt.s32.totalorder %s9, 3
    %p113 = pnand %p111, %p112
    %p114 = pneg %p113
    // Predicated region
    $region9: #{tpu_custom_call.1} parent=5 // pred_check
      _
    $region10: #{tpu_custom_call.1} parent=5 // pred_check_branch
      %116 = sbr.rel (%p113) target = $region12
    $region11: #{tpu_custom_call.1} parent=5 // pred_region
      %s117 = ssub.s32 %s9, 1
      // Predicated region
      $region13: #{tpu_custom_call.1} parent=11 // pred_check
        %p118 = pneg %p56
      $region14: #{tpu_custom_call.1} parent=11 // pred_check_branch
        %120 = sbr.rel (%p118) target = $region16
      $region15: #{tpu_custom_call.1} parent=11 // pred_region
        _
      $region16: #{tpu_custom_call.1} parent=11 // pred_fallthru
        _
      // Predicated region
      $region17: #{tpu_custom_call.1} parent=11 // pred_check
        %p121 = pneg %p77
      $region18: #{tpu_custom_call.1} parent=11 // pred_check_branch
        %123 = sbr.rel (%p121) target = $region20
      $region19: #{tpu_custom_call.1} parent=11 // pred_region
        _
      $region20: #{tpu_custom_call.1} parent=11 // pred_fallthru
        _
    $region12: #{tpu_custom_call.1} parent=5 // pred_fallthru
      _
    %p124 = scmp.lt.s32.totalorder %s9, 2
    // Predicated region
    $region21: #{tpu_custom_call.1} parent=5 // pred_check
      %p125 = pneg %p124
    $region22: #{tpu_custom_call.1} parent=5 // pred_check_branch
      %127 = sbr.rel (%p125) target = $region24
    $region23: #{tpu_custom_call.1} parent=5 // pred_region
      // Predicated region
      $region25: #{tpu_custom_call.1} parent=23 // pred_check
        %p128 = pneg %p29
      $region26: #{tpu_custom_call.1} parent=23 // pred_check_branch
        %130 = sbr.rel (%p128) target = $region28
      $region27: #{tpu_custom_call.1} parent=23 // pred_region
        %s131 = smul.u32 32, %s9
        %p132 = scmp.lt.s32.totalorder %s131, 63
        %s133 = scalar_select %p132, %s131, 63
        %s134 = smul.addr %s133, 4
        %s135 = scalar_lea.vmem %s0, %s134
        %s136 = smul.u32 32, %s9
      $region28: #{tpu_custom_call.1} parent=23 // pred_fallthru
        _
    $region24: #{tpu_custom_call.1} parent=5 // pred_fallthru
      _
    %p137 = scmp.le.s32.totalorder 1, %s9
    %p138 = scmp.lt.s32.totalorder %s9, 3
    %p139 = pnand %p137, %p138
    %p140 = pneg %p139
    // Predicated region
    $region29: #{tpu_custom_call.1} parent=5 // pred_check
      _
    $region30: #{tpu_custom_call.1} parent=5 // pred_check_branch
      %142 = sbr.rel (%p139) target = $region32
    $region31: #{tpu_custom_call.1} parent=5 // pred_region
      %s143 = ssub.s32 %s9, 1
      %s144 = smul.u32 32, %s14
      %p145 = scmp.lt.s32.totalorder %s144, 63
      %s146 = scalar_select %p145, %s144, 63
      %s147 = smul.addr %s146, 4
      %s148 = scalar_lea.vmem %s0, %s147
      %p149 = pneg %p35
      %p150 = pneg %p32
      %p151 = pneg %p56
      %p152 = pneg %p53
      %p153 = pneg %p77
      %p154 = pneg %p74
      %p155 = pneg %p103
      %p156 = pneg %p100
      %s157 = smul.u32 32, %s14
      %p158 = scmp.lt.s32.totalorder %s157, 63
      %s159 = scalar_select %p158, %s157, 63
      %s160 = smul.addr %s159, 4
      %s161 = scalar_lea.vmem %s3, %s160
      %s162 = smul.u32 32, %s14
      %p163 = scmp.lt.s32.totalorder %s162, 63
      %s164 = scalar_select %p163, %s162, 63
      %s165 = smul.addr %s164, 4
      %s166 = scalar_lea.vmem %s0, %s165
      %s167 = smul.u32 32, %s14
      %s168 = smul.u32 32, %s14
      %p169 = scmp.lt.s32.totalorder %s168, 63
      %s170 = scalar_select %p169, %s168, 63
      %s171 = smul.addr %s170, 4
      %s172 = scalar_lea.vmem %s3, %s171
      %s173 = smul.u32 32, %s14
      %v175 = vld [vmem:[%s166] sm:$0xf]
      %v176 = vld [vmem:[%s166 + $0x4] sm:$0xf]
      %v177 = vld [vmem:[%s166 + $0x8] sm:$0xf]
      %v178 = vld [vmem:[%s166 + $0xc] sm:$0xf]
      %v179 = vld [vmem:[%s166 + $0x10] sm:$0xf]
      %v180 = vld [vmem:[%s166 + $0x14] sm:$0xf]
      %v181 = vld [vmem:[%s166 + $0x18] sm:$0xf]
      %v182 = vld [vmem:[%s166 + $0x1c] sm:$0xf]
      %v183 = vld [vmem:[%s166 + $0x20] sm:$0xf]
      %v184 = vld [vmem:[%s166 + $0x24] sm:$0xf]
      %v185 = vld [vmem:[%s166 + $0x28] sm:$0xf]
      %v186 = vld [vmem:[%s166 + $0x2c] sm:$0xf]
      %v187 = vld [vmem:[%s166 + $0x30] sm:$0xf]
      %v188 = vld [vmem:[%s166 + $0x34] sm:$0xf]
      %v189 = vld [vmem:[%s166 + $0x38] sm:$0xf]
      %v190 = vld [vmem:[%s166 + $0x3c] sm:$0xf]
      %v191 = vld [vmem:[%s166 + $0x40] sm:$0xf]
      %v192 = vld [vmem:[%s166 + $0x44] sm:$0xf]
      %v193 = vld [vmem:[%s166 + $0x48] sm:$0xf]
      %v194 = vld [vmem:[%s166 + $0x4c] sm:$0xf]
      %v195 = vld [vmem:[%s166 + $0x50] sm:$0xf]
      %v196 = vld [vmem:[%s166 + $0x54] sm:$0xf]
      %v197 = vld [vmem:[%s166 + $0x58] sm:$0xf]
      %v198 = vld [vmem:[%s166 + $0x5c] sm:$0xf]
      %v199 = vld [vmem:[%s166 + $0x60] sm:$0xf]
      %v200 = vld [vmem:[%s166 + $0x64] sm:$0xf]
      %v201 = vld [vmem:[%s166 + $0x68] sm:$0xf]
      %v202 = vld [vmem:[%s166 + $0x6c] sm:$0xf]
      %v203 = vld [vmem:[%s166 + $0x70] sm:$0xf]
      %v204 = vld [vmem:[%s166 + $0x74] sm:$0xf]
      %v205 = vld [vmem:[%s166 + $0x78] sm:$0xf]
      %v206 = vld [vmem:[%s166 + $0x7c] sm:$0xf]
      %v207 = vld [vmem:[%s1] sm:$0xf]
      %v208 = vld [vmem:[%s1 + $0x4] sm:$0xf]
      %v209 = vld [vmem:[%s1 + $0x8] sm:$0xf]
      %v210 = vld [vmem:[%s1 + $0xc] sm:$0xf]
      %v211 = vld [vmem:[%s1 + $0x10] sm:$0xf]
      %v212 = vld [vmem:[%s1 + $0x14] sm:$0xf]
      %v213 = vld [vmem:[%s1 + $0x18] sm:$0xf]
      %v214 = vld [vmem:[%s1 + $0x1c] sm:$0xf]
      %v215 = vld [vmem:[%s1 + $0x20] sm:$0xf]
      %v216 = vld [vmem:[%s1 + $0x24] sm:$0x3]
      %v217 = vld [vmem:[%s2] sm:$0x1]
      %v219 = vlaneseq
      %v220 = vshrl.u32 %v219, 7
      %v221 = vsub.s32 0, %v220
      %v222 = vrot.slane %v217, %v221
      %v256 = vunpack.c.l.b16 %v175
      %v257 = vunpack.c.l.b16 %v176
      %v258 = vunpack.c.l.b16 %v177
      %v259 = vunpack.c.l.b16 %v178
      %v260 = vunpack.c.l.b16 %v179
      %v261 = vunpack.c.l.b16 %v180
      %v262 = vunpack.c.l.b16 %v181
      %v263 = vunpack.c.l.b16 %v182
      %v264 = vunpack.c.l.b16 %v183
      %v265 = vunpack.c.l.b16 %v184
      %v266 = vunpack.c.l.b16 %v185
      %v267 = vunpack.c.l.b16 %v186
      %v268 = vunpack.c.l.b16 %v187
      %v269 = vunpack.c.l.b16 %v188
      %v270 = vunpack.c.l.b16 %v189
      %v271 = vunpack.c.l.b16 %v190
      %v272 = vunpack.c.l.b16 %v191
      %v273 = vunpack.c.l.b16 %v192
      %v274 = vunpack.c.l.b16 %v193
      %v275 = vunpack.c.l.b16 %v194
      %v276 = vunpack.c.l.b16 %v195
      %v277 = vunpack.c.l.b16 %v196
      %v278 = vunpack.c.l.b16 %v197
      %v279 = vunpack.c.l.b16 %v198
      %v280 = vunpack.c.l.b16 %v199
      %v281 = vunpack.c.l.b16 %v200
      %v282 = vunpack.c.l.b16 %v201
      %v283 = vunpack.c.l.b16 %v202
      %v284 = vunpack.c.l.b16 %v203
      %v285 = vunpack.c.l.b16 %v204
      %v286 = vunpack.c.l.b16 %v205
      %v287 = vunpack.c.l.b16 %v206
      %v288 = vpack.c.b16 %v257, %v256
      %v289 = vpack.c.b16 %v259, %v258
      %v290 = vpack.c.b16 %v261, %v260
      %v291 = vpack.c.b16 %v263, %v262
      %v292 = vpack.c.b16 %v265, %v264
      %v293 = vpack.c.b16 %v267, %v266
      %v294 = vpack.c.b16 %v269, %v268
      %v295 = vpack.c.b16 %v271, %v270
      %v296 = vpack.c.b16 %v273, %v272
      %v297 = vpack.c.b16 %v275, %v274
      %v298 = vpack.c.b16 %v277, %v276
      %v299 = vpack.c.b16 %v279, %v278
      %v300 = vpack.c.b16 %v281, %v280
      %v301 = vpack.c.b16 %v283, %v282
      %v302 = vpack.c.b16 %v285, %v284
      %v303 = vpack.c.b16 %v287, %v286
      %v314 = vunpack.c.l.b16 %v207
      %v315 = vunpack.c.l.b16 %v208
      %v316 = vunpack.c.l.b16 %v209
      %v317 = vunpack.c.l.b16 %v210
      %v318 = vunpack.c.l.b16 %v211
      %v319 = vunpack.c.l.b16 %v212
      %v320 = vunpack.c.l.b16 %v213
      %v321 = vunpack.c.l.b16 %v214
      %v322 = vunpack.c.l.b16 %v215
      %v323 = vunpack.c.l.b16 %v216
      %v324 = vpack.c.b16 %v315, %v314
      %v325 = vpack.c.b16 %v317, %v316
      %v326 = vpack.c.b16 %v319, %v318
      %v327 = vpack.c.b16 %v321, %v320
      %v328 = vpack.c.b16 %v323, %v322
      %vm333 = vcmask 613376
      %v335 = vsel %vm333, %v288, 0
      %v338 = vsel %vm333, %v289, 0
      %v341 = vsel %vm333, %v290, 0
      %v344 = vsel %vm333, %v291, 0
      %v347 = vsel %vm333, %v292, 0
      %v350 = vsel %vm333, %v293, 0
      %v353 = vsel %vm333, %v294, 0
      %v356 = vsel %vm333, %v295, 0
      %v359 = vsel %vm333, %v296, 0
      %v362 = vsel %vm333, %v297, 0
      %v365 = vsel %vm333, %v298, 0
      %v368 = vsel %vm333, %v299, 0
      %v371 = vsel %vm333, %v300, 0
      %v374 = vsel %vm333, %v301, 0
      %v377 = vsel %vm333, %v302, 0
      %v380 = vsel %vm333, %v303, 0
      %vm382 = vcmask 1044480
      %vm383 = vcmask 1045504
      %v384 = vsel %vm382, 4294967295, 65535
      %v385 = vsel %vm383, %v384, 0
      %v387 = vand.u32 %v328, %v385
      %389 = vmatprep.subr.bf16.mxu0 0
      %390 = vmatpush1.bf16.msra.mxu0 %v324
      %391 = vmatprep.subr.bf16.mxu0 0
      %392 = vmatpush1.bf16.msra.mxu0 %v325
      %393 = vmatprep.subr.bf16.mxu0 0
      %394 = vmatpush1.bf16.msra.mxu0 %v326
      %395 = vmatprep.subr.bf16.mxu0 0
      %396 = vmatpush1.bf16.msra.mxu0 %v327
      %397 = vmatprep.subr.bf16.mxu0 0
      %398 = vmatpush1.bf16.msra.mxu0 %v387
      %399 = vmatprep.subr.bf16.mxu0 0
      %400 = vmatpush1.bf16.msra.mxu0 0
      %401 = vmatprep.subr.bf16.mxu0 0
      %402 = vmatpush1.bf16.msra.mxu0 0
      %403 = vmatprep.subr.bf16.mxu0 0
      %404 = vmatpush1.bf16.msra.mxu0 0
      %405 = vmatprep.subr.bf16.mxu0 0
      %406 = vmatpush1.bf16.msra.mxu0 0
      %407 = vmatprep.subr.bf16.mxu0 0
      %408 = vmatpush1.bf16.msra.mxu0 0
      %409 = vmatprep.subr.bf16.mxu0 0
      %410 = vmatpush1.bf16.msra.mxu0 0
      %411 = vmatprep.subr.bf16.mxu0 0
      %412 = vmatpush1.bf16.msra.mxu0 0
      %413 = vmatprep.subr.bf16.mxu0 0
      %414 = vmatpush1.bf16.msra.mxu0 0
      %415 = vmatprep.subr.bf16.mxu0 0
      %416 = vmatpush1.bf16.msra.mxu0 0
      %417 = vmatprep.subr.bf16.mxu0 0
      %418 = vmatpush1.bf16.msra.mxu0 0
      %419 = vmatprep.subr.bf16.mxu0 0
      %420 = vmatpush1.bf16.msra.mxu0 0
      %421 = vmatprep.mubr.bf16.mxu0 0
      %422 = vmatmul.mubr.bf16.gmra.mrb[0].mxu0 %v335
      %v423 = vpop.f32.mrb[0].mxu0
      %v424 = vadd.f32 %v222, %v423
      %v425 = vpop.f32.mrb[0].mxu0
      %v426 = vpop.f32.mrb[0].mxu0
      %v427 = vadd.f32 %v222, %v426
      %v428 = vpop.f32.mrb[0].mxu0
      %429 = vmatprep.mubr.bf16.mxu0 0
      %430 = vmatmul.mubr.bf16.gmra.mrb[0].mxu0 %v338
      %v431 = vpop.f32.mrb[0].mxu0
      %v432 = vadd.f32 %v222, %v431
      %v433 = vpop.f32.mrb[0].mxu0
      %v434 = vpop.f32.mrb[0].mxu0
      %v435 = vadd.f32 %v222, %v434
      %v436 = vpop.f32.mrb[0].mxu0
      %437 = vmatprep.mubr.bf16.mxu0 0
      %438 = vmatmul.mubr.bf16.gmra.mrb[0].mxu0 %v341
      %v439 = vpop.f32.mrb[0].mxu0
      %v440 = vadd.f32 %v222, %v439
      %v441 = vpop.f32.mrb[0].mxu0
      %v442 = vpop.f32.mrb[0].mxu0
      %v443 = vadd.f32 %v222, %v442
      %v444 = vpop.f32.mrb[0].mxu0
      %445 = vmatprep.mubr.bf16.mxu0 0
      %446 = vmatmul.mubr.bf16.gmra.mrb[0].mxu0 %v344
      %v447 = vpop.f32.mrb[0].mxu0
      %v448 = vadd.f32 %v222, %v447
      %v449 = vpop.f32.mrb[0].mxu0
      %v450 = vpop.f32.mrb[0].mxu0
      %v451 = vadd.f32 %v222, %v450
      %v452 = vpop.f32.mrb[0].mxu0
      %453 = vmatprep.mubr.bf16.mxu0 0
      %454 = vmatmul.mubr.bf16.gmra.mrb[0].mxu0 %v347
      %v455 = vpop.f32.mrb[0].mxu0
      %v456 = vadd.f32 %v222, %v455
      %v457 = vpop.f32.mrb[0].mxu0
      %v458 = vpop.f32.mrb[0].mxu0
      %v459 = vadd.f32 %v222, %v458
      %v460 = vpop.f32.mrb[0].mxu0
      %461 = vmatprep.mubr.bf16.mxu0 0
      %462 = vmatmul.mubr.bf16.gmra.mrb[0].mxu0 %v350
      %v463 = vpop.f32.mrb[0].mxu0
      %v464 = vadd.f32 %v222, %v463
      %v465 = vpop.f32.mrb[0].mxu0
      %v466 = vpop.f32.mrb[0].mxu0
      %v467 = vadd.f32 %v222, %v466
      %v468 = vpop.f32.mrb[0].mxu0
      %469 = vmatprep.mubr.bf16.mxu0 0
      %470 = vmatmul.mubr.bf16.gmra.mrb[0].mxu0 %v353
      %v471 = vpop.f32.mrb[0].mxu0
      %v472 = vadd.f32 %v222, %v471
      %v473 = vpop.f32.mrb[0].mxu0
      %v474 = vpop.f32.mrb[0].mxu0
      %v475 = vadd.f32 %v222, %v474
      %v476 = vpop.f32.mrb[0].mxu0
      %477 = vmatprep.mubr.bf16.mxu0 0
      %478 = vmatmul.mubr.bf16.gmra.mrb[0].mxu0 %v356
      %v479 = vpop.f32.mrb[0].mxu0
      %v480 = vadd.f32 %v222, %v479
      %v481 = vpop.f32.mrb[0].mxu0
      %v482 = vpop.f32.mrb[0].mxu0
      %v483 = vadd.f32 %v222, %v482
      %v484 = vpop.f32.mrb[0].mxu0
      %485 = vmatprep.mubr.bf16.mxu0 0
      %486 = vmatmul.mubr.bf16.gmra.mrb[0].mxu0 %v359
      %v487 = vpop.f32.mrb[0].mxu0
      %v488 = vadd.f32 %v222, %v487
      %v489 = vpop.f32.mrb[0].mxu0
      %v490 = vpop.f32.mrb[0].mxu0
      %v491 = vadd.f32 %v222, %v490
      %v492 = vpop.f32.mrb[0].mxu0
      %493 = vmatprep.mubr.bf16.mxu0 0
      %494 = vmatmul.mubr.bf16.gmra.mrb[0].mxu0 %v362
      %v495 = vpop.f32.mrb[0].mxu0
      %v496 = vadd.f32 %v222, %v495
      %v497 = vpop.f32.mrb[0].mxu0
      %v498 = vpop.f32.mrb[0].mxu0
      %v499 = vadd.f32 %v222, %v498
      %v500 = vpop.f32.mrb[0].mxu0
      %501 = vmatprep.mubr.bf16.mxu0 0
      %502 = vmatmul.mubr.bf16.gmra.mrb[0].mxu0 %v365
      %v503 = vpop.f32.mrb[0].mxu0
      %v504 = vadd.f32 %v222, %v503
      %v505 = vpop.f32.mrb[0].mxu0
      %v506 = vpop.f32.mrb[0].mxu0
      %v507 = vadd.f32 %v222, %v506
      %v508 = vpop.f32.mrb[0].mxu0
      %509 = vmatprep.mubr.bf16.mxu0 0
      %510 = vmatmul.mubr.bf16.gmra.mrb[0].mxu0 %v368
      %v511 = vpop.f32.mrb[0].mxu0
      %v512 = vadd.f32 %v222, %v511
      %v513 = vpop.f32.mrb[0].mxu0
      %v514 = vpop.f32.mrb[0].mxu0
      %v515 = vadd.f32 %v222, %v514
      %v516 = vpop.f32.mrb[0].mxu0
      %517 = vmatprep.mubr.bf16.mxu0 0
      %518 = vmatmul.mubr.bf16.gmra.mrb[0].mxu0 %v371
      %v519 = vpop.f32.mrb[0].mxu0
      %v520 = vadd.f32 %v222, %v519
      %v521 = vpop.f32.mrb[0].mxu0
      %v522 = vpop.f32.mrb[0].mxu0
      %v523 = vadd.f32 %v222, %v522
      %v524 = vpop.f32.mrb[0].mxu0
      %525 = vmatprep.mubr.bf16.mxu0 0
      %526 = vmatmul.mubr.bf16.gmra.mrb[0].mxu0 %v374
      %v527 = vpop.f32.mrb[0].mxu0
      %v528 = vadd.f32 %v222, %v527
      %v529 = vpop.f32.mrb[0].mxu0
      %v530 = vpop.f32.mrb[0].mxu0
      %v531 = vadd.f32 %v222, %v530
      %v532 = vpop.f32.mrb[0].mxu0
      %533 = vmatprep.mubr.bf16.mxu0 0
      %534 = vmatmul.mubr.bf16.gmra.mrb[0].mxu0 %v377
      %v535 = vpop.f32.mrb[0].mxu0
      %v536 = vadd.f32 %v222, %v535
      %v537 = vpop.f32.mrb[0].mxu0
      %v538 = vpop.f32.mrb[0].mxu0
      %v539 = vadd.f32 %v222, %v538
      %v540 = vpop.f32.mrb[0].mxu0
      %541 = vmatprep.mubr.bf16.mxu0 0
      %542 = vmatmul.mubr.bf16.gmra.mrb[0].mxu0 %v380
      %v543 = vpop.f32.mrb[0].mxu0
      %v544 = vadd.f32 %v222, %v543
      %v545 = vpop.f32.mrb[0].mxu0
      %v546 = vpop.f32.mrb[0].mxu0
      %v547 = vadd.f32 %v222, %v546
      %v548 = vpop.f32.mrb[0].mxu0
      %549 = vdwg.mxu0
      %v550 = vmin.f32 %v424, 0.0
      %v551 = vmin.f32 %v427, 0.0
      %v552 = vmin.f32 %v432, 0.0
      %v553 = vmin.f32 %v435, 0.0
      %v554 = vmin.f32 %v440, 0.0
      %v555 = vmin.f32 %v443, 0.0
      %v556 = vmin.f32 %v448, 0.0
      %v557 = vmin.f32 %v451, 0.0
      %v558 = vmin.f32 %v456, 0.0
      %v559 = vmin.f32 %v459, 0.0
      %v560 = vmin.f32 %v464, 0.0
      %v561 = vmin.f32 %v467, 0.0
      %v562 = vmin.f32 %v472, 0.0
      %v563 = vmin.f32 %v475, 0.0
      %v564 = vmin.f32 %v480, 0.0
      %v565 = vmin.f32 %v483, 0.0
      %v566 = vmin.f32 %v488, 0.0
      %v567 = vmin.f32 %v491, 0.0
      %v568 = vmin.f32 %v496, 0.0
      %v569 = vmin.f32 %v499, 0.0
      %v570 = vmin.f32 %v504, 0.0
      %v571 = vmin.f32 %v507, 0.0
      %v572 = vmin.f32 %v512, 0.0
      %v573 = vmin.f32 %v515, 0.0
      %v574 = vmin.f32 %v520, 0.0
      %v575 = vmin.f32 %v523, 0.0
      %v576 = vmin.f32 %v528, 0.0
      %v577 = vmin.f32 %v531, 0.0
      %v578 = vmin.f32 %v536, 0.0
      %v579 = vmin.f32 %v539, 0.0
      %v580 = vmin.f32 %v544, 0.0
      %v581 = vmin.f32 %v547, 0.0
      %v582 = vmul.f32 %v550, 1.442695
      %v583 = vpow.pop %v582
      %v584 = vmul.f32 %v551, 1.442695
      %v585 = vpow.pop %v584
      %v586 = vmul.f32 %v552, 1.442695
      %v587 = vpow.pop %v586
      %v588 = vmul.f32 %v553, 1.442695
      %v589 = vpow.pop %v588
      %v590 = vmul.f32 %v554, 1.442695
      %v591 = vpow.pop %v590
      %v592 = vmul.f32 %v555, 1.442695
      %v593 = vpow.pop %v592
      %v594 = vmul.f32 %v556, 1.442695
      %v595 = vpow.pop %v594
      %v596 = vmul.f32 %v557, 1.442695
      %v597 = vpow.pop %v596
      %v598 = vmul.f32 %v558, 1.442695
      %v599 = vpow.pop %v598
      %v600 = vmul.f32 %v559, 1.442695
      %v601 = vpow.pop %v600
      %v602 = vmul.f32 %v560, 1.442695
      %v603 = vpow.pop %v602
      %v604 = vmul.f32 %v561, 1.442695
      %v605 = vpow.pop %v604
      %v606 = vmul.f32 %v562, 1.442695
      %v607 = vpow.pop %v606
      %v608 = vmul.f32 %v563, 1.442695
      %v609 = vpow.pop %v608
      %v610 = vmul.f32 %v564, 1.442695
      %v611 = vpow.pop %v610
      %v612 = vmul.f32 %v565, 1.442695
      %v613 = vpow.pop %v612
      %v614 = vmul.f32 %v566, 1.442695
      %v615 = vpow.pop %v614
      %v616 = vmul.f32 %v567, 1.442695
      %v617 = vpow.pop %v616
      %v618 = vmul.f32 %v568, 1.442695
      %v619 = vpow.pop %v618
      %v620 = vmul.f32 %v569, 1.442695
      %v621 = vpow.pop %v620
      %v622 = vmul.f32 %v570, 1.442695
      %v623 = vpow.pop %v622
      %v624 = vmul.f32 %v571, 1.442695
      %v625 = vpow.pop %v624
      %v626 = vmul.f32 %v572, 1.442695
      %v627 = vpow.pop %v626
      %v628 = vmul.f32 %v573, 1.442695
      %v629 = vpow.pop %v628
      %v630 = vmul.f32 %v574, 1.442695
      %v631 = vpow.pop %v630
      %v632 = vmul.f32 %v575, 1.442695
      %v633 = vpow.pop %v632
      %v634 = vmul.f32 %v576, 1.442695
      %v635 = vpow.pop %v634
      %v636 = vmul.f32 %v577, 1.442695
      %v637 = vpow.pop %v636
      %v638 = vmul.f32 %v578, 1.442695
      %v639 = vpow.pop %v638
      %v640 = vmul.f32 %v579, 1.442695
      %v641 = vpow.pop %v640
      %v642 = vmul.f32 %v580, 1.442695
      %v643 = vpow.pop %v642
      %v644 = vmul.f32 %v581, 1.442695
      %v645 = vpow.pop %v644
      %v646 = vsub.f32 %v583, 1.0
      %v647 = vsub.f32 %v585, 1.0
      %v648 = vsub.f32 %v587, 1.0
      %v649 = vsub.f32 %v589, 1.0
      %v650 = vsub.f32 %v591, 1.0
      %v651 = vsub.f32 %v593, 1.0
      %v652 = vsub.f32 %v595, 1.0
      %v653 = vsub.f32 %v597, 1.0
      %v654 = vsub.f32 %v599, 1.0
      %v655 = vsub.f32 %v601, 1.0
      %v656 = vsub.f32 %v603, 1.0
      %v657 = vsub.f32 %v605, 1.0
      %v658 = vsub.f32 %v607, 1.0
      %v659 = vsub.f32 %v609, 1.0
      %v660 = vsub.f32 %v611, 1.0
      %v661 = vsub.f32 %v613, 1.0
      %v662 = vsub.f32 %v615, 1.0
      %v663 = vsub.f32 %v617, 1.0
      %v664 = vsub.f32 %v619, 1.0
      %v665 = vsub.f32 %v621, 1.0
      %v666 = vsub.f32 %v623, 1.0
      %v667 = vsub.f32 %v625, 1.0
      %v668 = vsub.f32 %v627, 1.0
      %v669 = vsub.f32 %v629, 1.0
      %v670 = vsub.f32 %v631, 1.0
      %v671 = vsub.f32 %v633, 1.0
      %v672 = vsub.f32 %v635, 1.0
      %v673 = vsub.f32 %v637, 1.0
      %v674 = vsub.f32 %v639, 1.0
      %v675 = vsub.f32 %v641, 1.0
      %v676 = vsub.f32 %v643, 1.0
      %v677 = vsub.f32 %v645, 1.0
      %v678 = vmul.f32 %v550, 0.008333334
      %v679 = vmul.f32 %v551, 0.008333334
      %v680 = vmul.f32 %v552, 0.008333334
      %v681 = vmul.f32 %v553, 0.008333334
      %v682 = vmul.f32 %v554, 0.008333334
      %v683 = vmul.f32 %v555, 0.008333334
      %v684 = vmul.f32 %v556, 0.008333334
      %v685 = vmul.f32 %v557, 0.008333334
      %v686 = vmul.f32 %v558, 0.008333334
      %v687 = vmul.f32 %v559, 0.008333334
      %v688 = vmul.f32 %v560, 0.008333334
      %v689 = vmul.f32 %v561, 0.008333334
      %v690 = vmul.f32 %v562, 0.008333334
      %v691 = vmul.f32 %v563, 0.008333334
      %v692 = vmul.f32 %v564, 0.008333334
      %v693 = vmul.f32 %v565, 0.008333334
      %v694 = vmul.f32 %v566, 0.008333334
      %v695 = vmul.f32 %v567, 0.008333334
      %v696 = vmul.f32 %v568, 0.008333334
      %v697 = vmul.f32 %v569, 0.008333334
      %v698 = vmul.f32 %v570, 0.008333334
      %v699 = vmul.f32 %v571, 0.008333334
      %v700 = vmul.f32 %v572, 0.008333334
      %v701 = vmul.f32 %v573, 0.008333334
      %v702 = vmul.f32 %v574, 0.008333334
      %v703 = vmul.f32 %v575, 0.008333334
      %v704 = vmul.f32 %v576, 0.008333334
      %v705 = vmul.f32 %v577, 0.008333334
      %v706 = vmul.f32 %v578, 0.008333334
      %v707 = vmul.f32 %v579, 0.008333334
      %v708 = vmul.f32 %v580, 0.008333334
      %v709 = vmul.f32 %v581, 0.008333334
      %v710 = vadd.f32 %v678, 0.041666668
      %v711 = vadd.f32 %v679, 0.041666668
      %v712 = vadd.f32 %v680, 0.041666668
      %v713 = vadd.f32 %v681, 0.041666668
      %v714 = vadd.f32 %v682, 0.041666668
      %v715 = vadd.f32 %v683, 0.041666668
      %v716 = vadd.f32 %v684, 0.041666668
      %v717 = vadd.f32 %v685, 0.041666668
      %v718 = vadd.f32 %v686, 0.041666668
      %v719 = vadd.f32 %v687, 0.041666668
      %v720 = vadd.f32 %v688, 0.041666668
      %v721 = vadd.f32 %v689, 0.041666668
      %v722 = vadd.f32 %v690, 0.041666668
      %v723 = vadd.f32 %v691, 0.041666668
      %v724 = vadd.f32 %v692, 0.041666668
      %v725 = vadd.f32 %v693, 0.041666668
      %v726 = vadd.f32 %v694, 0.041666668
      %v727 = vadd.f32 %v695, 0.041666668
      %v728 = vadd.f32 %v696, 0.041666668
      %v729 = vadd.f32 %v697, 0.041666668
      %v730 = vadd.f32 %v698, 0.041666668
      %v731 = vadd.f32 %v699, 0.041666668
      %v732 = vadd.f32 %v700, 0.041666668
      %v733 = vadd.f32 %v701, 0.041666668
      %v734 = vadd.f32 %v702, 0.041666668
      %v735 = vadd.f32 %v703, 0.041666668
      %v736 = vadd.f32 %v704, 0.041666668
      %v737 = vadd.f32 %v705, 0.041666668
      %v738 = vadd.f32 %v706, 0.041666668
      %v739 = vadd.f32 %v707, 0.041666668
      %v740 = vadd.f32 %v708, 0.041666668
      %v741 = vadd.f32 %v709, 0.041666668
      %v742 = vmul.f32 %v550, %v710
      %v743 = vmul.f32 %v551, %v711
      %v744 = vmul.f32 %v552, %v712
      %v745 = vmul.f32 %v553, %v713
      %v746 = vmul.f32 %v554, %v714
      %v747 = vmul.f32 %v555, %v715
      %v748 = vmul.f32 %v556, %v716
      %v749 = vmul.f32 %v557, %v717
      %v750 = vmul.f32 %v558, %v718
      %v751 = vmul.f32 %v559, %v719
      %v752 = vmul.f32 %v560, %v720
      %v753 = vmul.f32 %v561, %v721
      %v754 = vmul.f32 %v562, %v722
      %v755 = vmul.f32 %v563, %v723
      %v756 = vmul.f32 %v564, %v724
      %v757 = vmul.f32 %v565, %v725
      %v758 = vmul.f32 %v566, %v726
      %v759 = vmul.f32 %v567, %v727
      %v760 = vmul.f32 %v568, %v728
      %v761 = vmul.f32 %v569, %v729
      %v762 = vmul.f32 %v570, %v730
      %v763 = vmul.f32 %v571, %v731
      %v764 = vmul.f32 %v572, %v732
      %v765 = vmul.f32 %v573, %v733
      %v766 = vmul.f32 %v574, %v734
      %v767 = vmul.f32 %v575, %v735
      %v768 = vmul.f32 %v576, %v736
      %v769 = vmul.f32 %v577, %v737
      %v770 = vmul.f32 %v578, %v738
      %v771 = vmul.f32 %v579, %v739
      %v772 = vmul.f32 %v580, %v740
      %v773 = vmul.f32 %v581, %v741
      %v774 = vadd.f32 %v742, 0.16666667
      %v775 = vadd.f32 %v743, 0.16666667
      %v776 = vadd.f32 %v744, 0.16666667
      %v777 = vadd.f32 %v745, 0.16666667
      %v778 = vadd.f32 %v746, 0.16666667
      %v779 = vadd.f32 %v747, 0.16666667
      %v780 = vadd.f32 %v748, 0.16666667
      %v781 = vadd.f32 %v749, 0.16666667
      %v782 = vadd.f32 %v750, 0.16666667
      %v783 = vadd.f32 %v751, 0.16666667
      %v784 = vadd.f32 %v752, 0.16666667
      %v785 = vadd.f32 %v753, 0.16666667
      %v786 = vadd.f32 %v754, 0.16666667
      %v787 = vadd.f32 %v755, 0.16666667
      %v788 = vadd.f32 %v756, 0.16666667
      %v789 = vadd.f32 %v757, 0.16666667
      %v790 = vadd.f32 %v758, 0.16666667
      %v791 = vadd.f32 %v759, 0.16666667
      %v792 = vadd.f32 %v760, 0.16666667
      %v793 = vadd.f32 %v761, 0.16666667
      %v794 = vadd.f32 %v762, 0.16666667
      %v795 = vadd.f32 %v763, 0.16666667
      %v796 = vadd.f32 %v764, 0.16666667
      %v797 = vadd.f32 %v765, 0.16666667
      %v798 = vadd.f32 %v766, 0.16666667
      %v799 = vadd.f32 %v767, 0.16666667
      %v800 = vadd.f32 %v768, 0.16666667
      %v801 = vadd.f32 %v769, 0.16666667
      %v802 = vadd.f32 %v770, 0.16666667
      %v803 = vadd.f32 %v771, 0.16666667
      %v804 = vadd.f32 %v772, 0.16666667
      %v805 = vadd.f32 %v773, 0.16666667
      %v806 = vmul.f32 %v550, %v774
      %v807 = vmul.f32 %v551, %v775
      %v808 = vmul.f32 %v552, %v776
      %v809 = vmul.f32 %v553, %v777
      %v810 = vmul.f32 %v554, %v778
      %v811 = vmul.f32 %v555, %v779
      %v812 = vmul.f32 %v556, %v780
      %v813 = vmul.f32 %v557, %v781
      %v814 = vmul.f32 %v558, %v782
      %v815 = vmul.f32 %v559, %v783
      %v816 = vmul.f32 %v560, %v784
      %v817 = vmul.f32 %v561, %v785
      %v818 = vmul.f32 %v562, %v786
      %v819 = vmul.f32 %v563, %v787
      %v820 = vmul.f32 %v564, %v788
      %v821 = vmul.f32 %v565, %v789
      %v822 = vmul.f32 %v566, %v790
      %v823 = vmul.f32 %v567, %v791
      %v824 = vmul.f32 %v568, %v792
      %v825 = vmul.f32 %v569, %v793
      %v826 = vmul.f32 %v570, %v794
      %v827 = vmul.f32 %v571, %v795
      %v828 = vmul.f32 %v572, %v796
      %v829 = vmul.f32 %v573, %v797
      %v830 = vmul.f32 %v574, %v798
      %v831 = vmul.f32 %v575, %v799
      %v832 = vmul.f32 %v576, %v800
      %v833 = vmul.f32 %v577, %v801
      %v834 = vmul.f32 %v578, %v802
      %v835 = vmul.f32 %v579, %v803
      %v836 = vmul.f32 %v580, %v804
      %v837 = vmul.f32 %v581, %v805
      %v838 = vadd.f32 %v806, 0.5
      %v839 = vadd.f32 %v807, 0.5
      %v840 = vadd.f32 %v808, 0.5
      %v841 = vadd.f32 %v809, 0.5
      %v842 = vadd.f32 %v810, 0.5
      %v843 = vadd.f32 %v811, 0.5
      %v844 = vadd.f32 %v812, 0.5
      %v845 = vadd.f32 %v813, 0.5
      %v846 = vadd.f32 %v814, 0.5
      %v847 = vadd.f32 %v815, 0.5
      %v848 = vadd.f32 %v816, 0.5
      %v849 = vadd.f32 %v817, 0.5
      %v850 = vadd.f32 %v818, 0.5
      %v851 = vadd.f32 %v819, 0.5
      %v852 = vadd.f32 %v820, 0.5
      %v853 = vadd.f32 %v821, 0.5
      %v854 = vadd.f32 %v822, 0.5
      %v855 = vadd.f32 %v823, 0.5
      %v856 = vadd.f32 %v824, 0.5
      %v857 = vadd.f32 %v825, 0.5
      %v858 = vadd.f32 %v826, 0.5
      %v859 = vadd.f32 %v827, 0.5
      %v860 = vadd.f32 %v828, 0.5
      %v861 = vadd.f32 %v829, 0.5
      %v862 = vadd.f32 %v830, 0.5
      %v863 = vadd.f32 %v831, 0.5
      %v864 = vadd.f32 %v832, 0.5
      %v865 = vadd.f32 %v833, 0.5
      %v866 = vadd.f32 %v834, 0.5
      %v867 = vadd.f32 %v835, 0.5
      %v868 = vadd.f32 %v836, 0.5
      %v869 = vadd.f32 %v837, 0.5
      %v870 = vmul.f32 %v550, %v838
      %v871 = vmul.f32 %v551, %v839
      %v872 = vmul.f32 %v552, %v840
      %v873 = vmul.f32 %v553, %v841
      %v874 = vmul.f32 %v554, %v842
      %v875 = vmul.f32 %v555, %v843
      %v876 = vmul.f32 %v556, %v844
      %v877 = vmul.f32 %v557, %v845
      %v878 = vmul.f32 %v558, %v846
      %v879 = vmul.f32 %v559, %v847
      %v880 = vmul.f32 %v560, %v848
      %v881 = vmul.f32 %v561, %v849
      %v882 = vmul.f32 %v562, %v850
      %v883 = vmul.f32 %v563, %v851
      %v884 = vmul.f32 %v564, %v852
      %v885 = vmul.f32 %v565, %v853
      %v886 = vmul.f32 %v566, %v854
      %v887 = vmul.f32 %v567, %v855
      %v888 = vmul.f32 %v568, %v856
      %v889 = vmul.f32 %v569, %v857
      %v890 = vmul.f32 %v570, %v858
      %v891 = vmul.f32 %v571, %v859
      %v892 = vmul.f32 %v572, %v860
      %v893 = vmul.f32 %v573, %v861
      %v894 = vmul.f32 %v574, %v862
      %v895 = vmul.f32 %v575, %v863
      %v896 = vmul.f32 %v576, %v864
      %v897 = vmul.f32 %v577, %v865
      %v898 = vmul.f32 %v578, %v866
      %v899 = vmul.f32 %v579, %v867
      %v900 = vmul.f32 %v580, %v868
      %v901 = vmul.f32 %v581, %v869
      %v902 = vadd.f32 %v870, 1.0
      %v903 = vadd.f32 %v871, 1.0
      %v904 = vadd.f32 %v872, 1.0
      %v905 = vadd.f32 %v873, 1.0
      %v906 = vadd.f32 %v874, 1.0
      %v907 = vadd.f32 %v875, 1.0
      %v908 = vadd.f32 %v876, 1.0
      %v909 = vadd.f32 %v877, 1.0
      %v910 = vadd.f32 %v878, 1.0
      %v911 = vadd.f32 %v879, 1.0
      %v912 = vadd.f32 %v880, 1.0
      %v913 = vadd.f32 %v881, 1.0
      %v914 = vadd.f32 %v882, 1.0
      %v915 = vadd.f32 %v883, 1.0
      %v916 = vadd.f32 %v884, 1.0
      %v917 = vadd.f32 %v885, 1.0
      %v918 = vadd.f32 %v886, 1.0
      %v919 = vadd.f32 %v887, 1.0
      %v920 = vadd.f32 %v888, 1.0
      %v921 = vadd.f32 %v889, 1.0
      %v922 = vadd.f32 %v890, 1.0
      %v923 = vadd.f32 %v891, 1.0
      %v924 = vadd.f32 %v892, 1.0
      %v925 = vadd.f32 %v893, 1.0
      %v926 = vadd.f32 %v894, 1.0
      %v927 = vadd.f32 %v895, 1.0
      %v928 = vadd.f32 %v896, 1.0
      %v929 = vadd.f32 %v897, 1.0
      %v930 = vadd.f32 %v898, 1.0
      %v931 = vadd.f32 %v899, 1.0
      %v932 = vadd.f32 %v900, 1.0
      %v933 = vadd.f32 %v901, 1.0
      %v934 = vmul.f32 %v550, %v902
      %v935 = vmul.f32 %v551, %v903
      %v936 = vmul.f32 %v552, %v904
      %v937 = vmul.f32 %v553, %v905
      %v938 = vmul.f32 %v554, %v906
      %v939 = vmul.f32 %v555, %v907
      %v940 = vmul.f32 %v556, %v908
      %v941 = vmul.f32 %v557, %v909
      %v942 = vmul.f32 %v558, %v910
      %v943 = vmul.f32 %v559, %v911
      %v944 = vmul.f32 %v560, %v912
      %v945 = vmul.f32 %v561, %v913
      %v946 = vmul.f32 %v562, %v914
      %v947 = vmul.f32 %v563, %v915
      %v948 = vmul.f32 %v564, %v916
      %v949 = vmul.f32 %v565, %v917
      %v950 = vmul.f32 %v566, %v918
      %v951 = vmul.f32 %v567, %v919
      %v952 = vmul.f32 %v568, %v920
      %v953 = vmul.f32 %v569, %v921
      %v954 = vmul.f32 %v570, %v922
      %v955 = vmul.f32 %v571, %v923
      %v956 = vmul.f32 %v572, %v924
      %v957 = vmul.f32 %v573, %v925
      %v958 = vmul.f32 %v574, %v926
      %v959 = vmul.f32 %v575, %v927
      %v960 = vmul.f32 %v576, %v928
      %v961 = vmul.f32 %v577, %v929
      %v962 = vmul.f32 %v578, %v930
      %v963 = vmul.f32 %v579, %v931
      %v964 = vmul.f32 %v580, %v932
      %v965 = vmul.f32 %v581, %v933
      %vm966 = vcmp.gt.f32.partialorder %v424, 0.0
      %vm967 = vcmp.gt.f32.partialorder %v427, 0.0
      %vm968 = vcmp.gt.f32.partialorder %v432, 0.0
      %vm969 = vcmp.gt.f32.partialorder %v435, 0.0
      %vm970 = vcmp.gt.f32.partialorder %v440, 0.0
      %vm971 = vcmp.gt.f32.partialorder %v443, 0.0
      %vm972 = vcmp.gt.f32.partialorder %v448, 0.0
      %vm973 = vcmp.gt.f32.partialorder %v451, 0.0
      %vm974 = vcmp.gt.f32.partialorder %v456, 0.0
      %vm975 = vcmp.gt.f32.partialorder %v459, 0.0
      %vm976 = vcmp.gt.f32.partialorder %v464, 0.0
      %vm977 = vcmp.gt.f32.partialorder %v467, 0.0
      %vm978 = vcmp.gt.f32.partialorder %v472, 0.0
      %vm979 = vcmp.gt.f32.partialorder %v475, 0.0
      %vm980 = vcmp.gt.f32.partialorder %v480, 0.0
      %vm981 = vcmp.gt.f32.partialorder %v483, 0.0
      %vm982 = vcmp.gt.f32.partialorder %v488, 0.0
      %vm983 = vcmp.gt.f32.partialorder %v491, 0.0
      %vm984 = vcmp.gt.f32.partialorder %v496, 0.0
      %vm985 = vcmp.gt.f32.partialorder %v499, 0.0
      %vm986 = vcmp.gt.f32.partialorder %v504, 0.0
      %vm987 = vcmp.gt.f32.partialorder %v507, 0.0
      %vm988 = vcmp.gt.f32.partialorder %v512, 0.0
      %vm989 = vcmp.gt.f32.partialorder %v515, 0.0
      %vm990 = vcmp.gt.f32.partialorder %v520, 0.0
      %vm991 = vcmp.gt.f32.partialorder %v523, 0.0
      %vm992 = vcmp.gt.f32.partialorder %v528, 0.0
      %vm993 = vcmp.gt.f32.partialorder %v531, 0.0
      %vm994 = vcmp.gt.f32.partialorder %v536, 0.0
      %vm995 = vcmp.gt.f32.partialorder %v539, 0.0
      %vm996 = vcmp.gt.f32.partialorder %v544, 0.0
      %vm997 = vcmp.gt.f32.partialorder %v547, 0.0
      %vm998 = vcmp.gt.f32.partialorder %v550, -0.25
      %vm999 = vcmp.gt.f32.partialorder %v551, -0.25
      %vm1000 = vcmp.gt.f32.partialorder %v552, -0.25
      %vm1001 = vcmp.gt.f32.partialorder %v553, -0.25
      %vm1002 = vcmp.gt.f32.partialorder %v554, -0.25
      %vm1003 = vcmp.gt.f32.partialorder %v555, -0.25
      %vm1004 = vcmp.gt.f32.partialorder %v556, -0.25
      %vm1005 = vcmp.gt.f32.partialorder %v557, -0.25
      %vm1006 = vcmp.gt.f32.partialorder %v558, -0.25
      %vm1007 = vcmp.gt.f32.partialorder %v559, -0.25
      %vm1008 = vcmp.gt.f32.partialorder %v560, -0.25
      %vm1009 = vcmp.gt.f32.partialorder %v561, -0.25
      %vm1010 = vcmp.gt.f32.partialorder %v562, -0.25
      %vm1011 = vcmp.gt.f32.partialorder %v563, -0.25
      %vm1012 = vcmp.gt.f32.partialorder %v564, -0.25
      %vm1013 = vcmp.gt.f32.partialorder %v565, -0.25
      %vm1014 = vcmp.gt.f32.partialorder %v566, -0.25
      %vm1015 = vcmp.gt.f32.partialorder %v567, -0.25
      %vm1016 = vcmp.gt.f32.partialorder %v568, -0.25
      %vm1017 = vcmp.gt.f32.partialorder %v569, -0.25
      %vm1018 = vcmp.gt.f32.partialorder %v570, -0.25
      %vm1019 = vcmp.gt.f32.partialorder %v571, -0.25
      %vm1020 = vcmp.gt.f32.partialorder %v572, -0.25
      %vm1021 = vcmp.gt.f32.partialorder %v573, -0.25
      %vm1022 = vcmp.gt.f32.partialorder %v574, -0.25
      %vm1023 = vcmp.gt.f32.partialorder %v575, -0.25
      %vm1024 = vcmp.gt.f32.partialorder %v576, -0.25
      %vm1025 = vcmp.gt.f32.partialorder %v577, -0.25
      %vm1026 = vcmp.gt.f32.partialorder %v578, -0.25
      %vm1027 = vcmp.gt.f32.partialorder %v579, -0.25
      %vm1028 = vcmp.gt.f32.partialorder %v580, -0.25
      %vm1029 = vcmp.gt.f32.partialorder %v581, -0.25
      %v1030 = vsel %vm998, %v934, %v646
      %v1031 = vsel %vm999, %v935, %v647
      %v1032 = vsel %vm1000, %v936, %v648
      %v1033 = vsel %vm1001, %v937, %v649
      %v1034 = vsel %vm1002, %v938, %v650
      %v1035 = vsel %vm1003, %v939, %v651
      %v1036 = vsel %vm1004, %v940, %v652
      %v1037 = vsel %vm1005, %v941, %v653
      %v1038 = vsel %vm1006, %v942, %v654
      %v1039 = vsel %vm1007, %v943, %v655
      %v1040 = vsel %vm1008, %v944, %v656
      %v1041 = vsel %vm1009, %v945, %v657
      %v1042 = vsel %vm1010, %v946, %v658
      %v1043 = vsel %vm1011, %v947, %v659
      %v1044 = vsel %vm1012, %v948, %v660
      %v1045 = vsel %vm1013, %v949, %v661
      %v1046 = vsel %vm1014, %v950, %v662
      %v1047 = vsel %vm1015, %v951, %v663
      %v1048 = vsel %vm1016, %v952, %v664
      %v1049 = vsel %vm1017, %v953, %v665
      %v1050 = vsel %vm1018, %v954, %v666
      %v1051 = vsel %vm1019, %v955, %v667
      %v1052 = vsel %vm1020, %v956, %v668
      %v1053 = vsel %vm1021, %v957, %v669
      %v1054 = vsel %vm1022, %v958, %v670
      %v1055 = vsel %vm1023, %v959, %v671
      %v1056 = vsel %vm1024, %v960, %v672
      %v1057 = vsel %vm1025, %v961, %v673
      %v1058 = vsel %vm1026, %v962, %v674
      %v1059 = vsel %vm1027, %v963, %v675
      %v1060 = vsel %vm1028, %v964, %v676
      %v1061 = vsel %vm1029, %v965, %v677
      %v1062 = vsel %vm966, %v424, %v1030
      %v1063 = vsel %vm967, %v427, %v1031
      %v1064 = vsel %vm968, %v432, %v1032
      %v1065 = vsel %vm969, %v435, %v1033
      %v1066 = vsel %vm970, %v440, %v1034
      %v1067 = vsel %vm971, %v443, %v1035
      %v1068 = vsel %vm972, %v448, %v1036
      %v1069 = vsel %vm973, %v451, %v1037
      %v1070 = vsel %vm974, %v456, %v1038
      %v1071 = vsel %vm975, %v459, %v1039
      %v1072 = vsel %vm976, %v464, %v1040
      %v1073 = vsel %vm977, %v467, %v1041
      %v1074 = vsel %vm978, %v472, %v1042
      %v1075 = vsel %vm979, %v475, %v1043
      %v1076 = vsel %vm980, %v480, %v1044
      %v1077 = vsel %vm981, %v483, %v1045
      %v1078 = vsel %vm982, %v488, %v1046
      %v1079 = vsel %vm983, %v491, %v1047
      %v1080 = vsel %vm984, %v496, %v1048
      %v1081 = vsel %vm985, %v499, %v1049
      %v1082 = vsel %vm986, %v504, %v1050
      %v1083 = vsel %vm987, %v507, %v1051
      %v1084 = vsel %vm988, %v512, %v1052
      %v1085 = vsel %vm989, %v515, %v1053
      %v1086 = vsel %vm990, %v520, %v1054
      %v1087 = vsel %vm991, %v523, %v1055
      %v1088 = vsel %vm992, %v528, %v1056
      %v1089 = vsel %vm993, %v531, %v1057
      %v1090 = vsel %vm994, %v536, %v1058
      %v1091 = vsel %vm995, %v539, %v1059
      %v1092 = vsel %vm996, %v544, %v1060
      %v1093 = vsel %vm997, %v547, %v1061
      %v1094 = vpack.c.bf16 %v1063, %v1062
      %v1095 = vpack.c.bf16 %v1065, %v1064
      %v1096 = vpack.c.bf16 %v1067, %v1066
      %v1097 = vpack.c.bf16 %v1069, %v1068
      %v1098 = vpack.c.bf16 %v1071, %v1070
      %v1099 = vpack.c.bf16 %v1073, %v1072
      %v1100 = vpack.c.bf16 %v1075, %v1074
      %v1101 = vpack.c.bf16 %v1077, %v1076
      %v1102 = vpack.c.bf16 %v1079, %v1078
      %v1103 = vpack.c.bf16 %v1081, %v1080
      %v1104 = vpack.c.bf16 %v1083, %v1082
      %v1105 = vpack.c.bf16 %v1085, %v1084
      %v1106 = vpack.c.bf16 %v1087, %v1086
      %v1107 = vpack.c.bf16 %v1089, %v1088
      %v1108 = vpack.c.bf16 %v1091, %v1090
      %v1109 = vpack.c.bf16 %v1093, %v1092
      %v1126 = vunpack.c.l.b16 %v1094
      %v1127 = vunpack.c.h.b16 %v1094
      %v1128 = vunpack.c.l.b16 %v1095
      %v1129 = vunpack.c.h.b16 %v1095
      %v1130 = vunpack.c.l.b16 %v1096
      %v1131 = vunpack.c.h.b16 %v1096
      %v1132 = vunpack.c.l.b16 %v1097
      %v1133 = vunpack.c.h.b16 %v1097
      %v1134 = vunpack.c.l.b16 %v1098
      %v1135 = vunpack.c.h.b16 %v1098
      %v1136 = vunpack.c.l.b16 %v1099
      %v1137 = vunpack.c.h.b16 %v1099
      %v1138 = vunpack.c.l.b16 %v1100
      %v1139 = vunpack.c.h.b16 %v1100
      %v1140 = vunpack.c.l.b16 %v1101
      %v1141 = vunpack.c.h.b16 %v1101
      %v1142 = vunpack.c.l.b16 %v1102
      %v1143 = vunpack.c.h.b16 %v1102
      %v1144 = vunpack.c.l.b16 %v1103
      %v1145 = vunpack.c.h.b16 %v1103
      %v1146 = vunpack.c.l.b16 %v1104
      %v1147 = vunpack.c.h.b16 %v1104
      %v1148 = vunpack.c.l.b16 %v1105
      %v1149 = vunpack.c.h.b16 %v1105
      %v1150 = vunpack.c.l.b16 %v1106
      %v1151 = vunpack.c.h.b16 %v1106
      %v1152 = vunpack.c.l.b16 %v1107
      %v1153 = vunpack.c.h.b16 %v1107
      %v1154 = vunpack.c.l.b16 %v1108
      %v1155 = vunpack.c.h.b16 %v1108
      %v1156 = vunpack.c.l.b16 %v1109
      %v1157 = vunpack.c.h.b16 %v1109
      %v1158 = vpack.c.b16 %v1126, %v1126
      %v1159 = vpack.c.b16 %v1127, %v1127
      %v1160 = vpack.c.b16 %v1128, %v1128
      %v1161 = vpack.c.b16 %v1129, %v1129
      %v1162 = vpack.c.b16 %v1130, %v1130
      %v1163 = vpack.c.b16 %v1131, %v1131
      %v1164 = vpack.c.b16 %v1132, %v1132
      %v1165 = vpack.c.b16 %v1133, %v1133
      %v1166 = vpack.c.b16 %v1134, %v1134
      %v1167 = vpack.c.b16 %v1135, %v1135
      %v1168 = vpack.c.b16 %v1136, %v1136
      %v1169 = vpack.c.b16 %v1137, %v1137
      %v1170 = vpack.c.b16 %v1138, %v1138
      %v1171 = vpack.c.b16 %v1139, %v1139
      %v1172 = vpack.c.b16 %v1140, %v1140
      %v1173 = vpack.c.b16 %v1141, %v1141
      %v1174 = vpack.c.b16 %v1142, %v1142
      %v1175 = vpack.c.b16 %v1143, %v1143
      %v1176 = vpack.c.b16 %v1144, %v1144
      %v1177 = vpack.c.b16 %v1145, %v1145
      %v1178 = vpack.c.b16 %v1146, %v1146
      %v1179 = vpack.c.b16 %v1147, %v1147
      %v1180 = vpack.c.b16 %v1148, %v1148
      %v1181 = vpack.c.b16 %v1149, %v1149
      %v1182 = vpack.c.b16 %v1150, %v1150
      %v1183 = vpack.c.b16 %v1151, %v1151
      %v1184 = vpack.c.b16 %v1152, %v1152
      %v1185 = vpack.c.b16 %v1153, %v1153
      %v1186 = vpack.c.b16 %v1154, %v1154
      %v1187 = vpack.c.b16 %v1155, %v1155
      %v1188 = vpack.c.b16 %v1156, %v1156
      %v1189 = vpack.c.b16 %v1157, %v1157
      %vm1222 = vcmask 60416
      %1223 = vst.msk [vmem:[%s172] sm:$0xf] %vm1222, %v1158
      %1224 = vst.msk [vmem:[%s172 + $0x4] sm:$0xf] %vm1222, %v1159
      %1225 = vst.msk [vmem:[%s172 + $0x8] sm:$0xf] %vm1222, %v1160
      %1226 = vst.msk [vmem:[%s172 + $0xc] sm:$0xf] %vm1222, %v1161
      %1227 = vst.msk [vmem:[%s172 + $0x10] sm:$0xf] %vm1222, %v1162
      %1228 = vst.msk [vmem:[%s172 + $0x14] sm:$0xf] %vm1222, %v1163
      %1229 = vst.msk [vmem:[%s172 + $0x18] sm:$0xf] %vm1222, %v1164
      %1230 = vst.msk [vmem:[%s172 + $0x1c] sm:$0xf] %vm1222, %v1165
      %1231 = vst.msk [vmem:[%s172 + $0x20] sm:$0xf] %vm1222, %v1166
      %1232 = vst.msk [vmem:[%s172 + $0x24] sm:$0xf] %vm1222, %v1167
      %1233 = vst.msk [vmem:[%s172 + $0x28] sm:$0xf] %vm1222, %v1168
      %1234 = vst.msk [vmem:[%s172 + $0x2c] sm:$0xf] %vm1222, %v1169
      %1235 = vst.msk [vmem:[%s172 + $0x30] sm:$0xf] %vm1222, %v1170
      %1236 = vst.msk [vmem:[%s172 + $0x34] sm:$0xf] %vm1222, %v1171
      %1237 = vst.msk [vmem:[%s172 + $0x38] sm:$0xf] %vm1222, %v1172
      %1238 = vst.msk [vmem:[%s172 + $0x3c] sm:$0xf] %vm1222, %v1173
      %1239 = vst.msk [vmem:[%s172 + $0x40] sm:$0xf] %vm1222, %v1174
      %1240 = vst.msk [vmem:[%s172 + $0x44] sm:$0xf] %vm1222, %v1175
      %1241 = vst.msk [vmem:[%s172 + $0x48] sm:$0xf] %vm1222, %v1176
      %1242 = vst.msk [vmem:[%s172 + $0x4c] sm:$0xf] %vm1222, %v1177
      %1243 = vst.msk [vmem:[%s172 + $0x50] sm:$0xf] %vm1222, %v1178
      %1244 = vst.msk [vmem:[%s172 + $0x54] sm:$0xf] %vm1222, %v1179
      %1245 = vst.msk [vmem:[%s172 + $0x58] sm:$0xf] %vm1222, %v1180
      %1246 = vst.msk [vmem:[%s172 + $0x5c] sm:$0xf] %vm1222, %v1181
      %1247 = vst.msk [vmem:[%s172 + $0x60] sm:$0xf] %vm1222, %v1182
      %1248 = vst.msk [vmem:[%s172 + $0x64] sm:$0xf] %vm1222, %v1183
      %1249 = vst.msk [vmem:[%s172 + $0x68] sm:$0xf] %vm1222, %v1184
      %1250 = vst.msk [vmem:[%s172 + $0x6c] sm:$0xf] %vm1222, %v1185
      %1251 = vst.msk [vmem:[%s172 + $0x70] sm:$0xf] %vm1222, %v1186
      %1252 = vst.msk [vmem:[%s172 + $0x74] sm:$0xf] %vm1222, %v1187
      %1253 = vst.msk [vmem:[%s172 + $0x78] sm:$0xf] %vm1222, %v1188
      %1254 = vst.msk [vmem:[%s172 + $0x7c] sm:$0xf] %vm1222, %v1189
      %s1255 = smul.u32 32, %s14
      %p1256 = scmp.lt.s32.totalorder %s1255, 63
      %s1257 = scalar_select %p1256, %s1255, 63
      %s1258 = smul.addr %s1257, 4
      %s1259 = scalar_lea.vmem %s3, %s1258
      // Predicated region
      $region33: #{tpu_custom_call.1} parent=31 // pred_check
        %p1260 = pneg %p100
      $region34: #{tpu_custom_call.1} parent=31 // pred_check_branch
        %1262 = sbr.rel (%p1260) target = $region36
      $region35: #{tpu_custom_call.1} parent=31 // pred_region
        %s1263 = smul.u32 32, %s14
      $region36: #{tpu_custom_call.1} parent=31 // pred_fallthru
        _
    $region32: #{tpu_custom_call.1} parent=5 // pred_fallthru
      _
    %p1264 = scmp.le.s32.totalorder 2, %s9
    // Predicated region
    $region37: #{tpu_custom_call.1} parent=5 // pred_check
      %p1265 = pneg %p1264
    $region38: #{tpu_custom_call.1} parent=5 // pred_check_branch
      %1267 = sbr.rel (%p1265) target = $region40
    $region39: #{tpu_custom_call.1} parent=5 // pred_region
      %s1268 = ssub.s32 %s9, 2
      // Predicated region
      $region41: #{tpu_custom_call.1} parent=39 // pred_check
        %p1269 = pneg %p106
      $region42: #{tpu_custom_call.1} parent=39 // pred_check_branch
        %1271 = sbr.rel (%p1269) target = $region44
      $region43: #{tpu_custom_call.1} parent=39 // pred_region
        %s1272 = smul.u32 32, %s15
        %p1273 = scmp.lt.s32.totalorder %s1272, 63
        %s1274 = scalar_select %p1273, %s1272, 63
        %s1275 = smul.addr %s1274, 4
        %s1276 = scalar_lea.vmem %s3, %s1275
      $region44: #{tpu_custom_call.1} parent=39 // pred_fallthru
        _
    $region40: #{tpu_custom_call.1} parent=5 // pred_fallthru
      _
  $region6: #{tpu_custom_call.1} parent=0 // loop_footer
    %s13 = sadd.s32 1, %s9
  $region7: #{tpu_custom_call.1} parent=0 // loop_footer_branch
    %8 = sbr.rel target = $region3
  $region8: #{tpu_custom_call.1} parent=0 // loop_exit
    _

</llo_original>
